<compile_context>
chip_gen: v7x
topology: tpu7x:2x2x1
jax: 0.10.0
libtpu: 0.0.40
codegen_flags: <defaults>
</compile_context>

<pallas_src>
import math
import jax
import jax.numpy as jnp
from jax.experimental import pallas as pl
from jax.experimental.pallas import tpu as pltpu


def _round_up(n, m):
    return ((n + m - 1) // m) * m


def _cdiv(a, b):
    return -(-a // b)


def mlp_kernel(x_ref,
               w1_ref, b1_ref,
               w2_ref, b2_ref,
               w3_ref, b3_ref,
               w4_ref, b4_ref,
               w5_ref, b5_ref,
               o_ref):
    def layer(h, w_ref, b_ref):
        # Cast only the MXU operands (bf16 when requested); accumulate in f32,
        # bias-add + ReLU in f32 via implicit (1, out) broadcast.
        h = h.astype(w_ref.dtype)
        y = jnp.dot(h, w_ref[...], preferred_element_type=jnp.float32) + b_ref[...]
        return jnp.maximum(y, 0.0)

    h = layer(x_ref[...], w1_ref, b1_ref)   # input_size -> 32
    h = layer(h, w2_ref, b2_ref)            # 32 -> 64
    h = layer(h, w3_ref, b3_ref)            # 64 -> 128
    h = layer(h, w4_ref, b4_ref)            # 128 -> 32
    h = layer(h, w5_ref, b5_ref)            # 32 -> output_size
    o_ref[...] = h.astype(o_ref.dtype)


def prepare_params(params, compute_dtype=jnp.bfloat16):
    """One-time parameter prep: cast weights to the MXU operand dtype, keep
    biases f32 ((1, out)) so bias-add/ReLU stay on the f32 VPU path.
    `params` is a list of (W_t, b) with W_t (in, out) [already transposed from
    the PyTorch (out, in) layout] and b (1, out)."""
    return [(w.astype(compute_dtype), b.astype(jnp.float32)) for w, b in params]


def rpe_model_forward(x, prepared_params, *, tile_b_max=8192):
    """x: (batch, input_size) f32. prepared_params: output of prepare_params."""
    batch, input_size = x.shape
    output_size = prepared_params[-1][0].shape[1]

    # Adaptive batch tiling: minimal padding (<= 7 dead rows per tile), and at
    # least two grid steps when there is enough work so both v7x TensorCores
    # get a share of the "parallel" batch axis.
    n_tiles = max(1, _cdiv(batch, tile_b_max))
    if n_tiles == 1 and batch >= 16:
        n_tiles = 2
    tile_b = _round_up(_cdiv(batch, n_tiles), 8)
    b_pad = tile_b * n_tiles

    x_p = x if b_pad == batch else jnp.pad(x, ((0, b_pad - batch), (0, 0)))

    grid = (n_tiles,)

    in_specs = [pl.BlockSpec((tile_b, input_size), lambda i: (i, 0))]
    flat_args = [x_p]
    for w, b in prepared_params:
        # Full-array blocks with a constant index_map -> weights stay resident
        # in VMEM across the whole batch grid.
        in_specs.append(pl.BlockSpec(w.shape, lambda i: (0, 0)))
        in_specs.append(pl.BlockSpec(b.shape, lambda i: (0, 0)))
        flat_args += [w, b]

    # Un-padded output: block last dim equals the full array last dim (legal),
    # so no 128-lane padding and no post-kernel slice over a padded buffer.
    out_specs = pl.BlockSpec((tile_b, output_size), lambda i: (i, 0))

    dims = [input_size] + [w.shape[1] for w, _ in prepared_params]
    flops = 2 * b_pad * sum(dims[i] * dims[i + 1] for i in range(len(dims) - 1))
    bytes_accessed = (
        x_p.size * x_p.dtype.itemsize
        + sum(a.size * a.dtype.itemsize for a in flat_args[1:])
        + b_pad * output_size * 4
    )

    out = pl.pallas_call(
        mlp_kernel,
        out_shape=jax.ShapeDtypeStruct((b_pad, output_size), jnp.float32),
        grid=grid,
        in_specs=in_specs,
        out_specs=out_specs,
        compiler_params=pltpu.CompilerParams(
            dimension_semantics=("parallel",),
            vmem_limit_bytes=48 * 1024 * 1024),
        cost_estimate=pl.CostEstimate(
            flops=flops, transcendentals=0, bytes_accessed=bytes_accessed),
    )(*flat_args)

    return out if b_pad == batch else out[:batch]


def init_linear_params(key, in_features, out_features):
    """Deterministic init mimicking nn.Linear default (uniform +/- 1/sqrt(fan_in)).
    Returns W transposed to (in, out) and bias as (1, out), both f32."""
    kw, kb = jax.random.split(key)
    bound = 1.0 / math.sqrt(in_features)
    w = jax.random.uniform(kw, (in_features, out_features), jnp.float32, -bound, bound)
    b = jax.random.uniform(kb, (1, out_features), jnp.float32, -bound, bound)
    return w, b


if __name__ == "__main__":
    input_size = 16
    output_size = 8
    batch = 37   # deliberately awkward: exercises padding + a 2-step grid

    root = jax.random.PRNGKey(0)
    keys = jax.random.split(root, 6)

    layer_dims = [(input_size, 32), (32, 64), (64, 128), (128, 32), (32, output_size)]
    params = [init_linear_params(keys[i], fi, fo) for i, (fi, fo) in enumerate(layer_dims)]

    x = jax.random.normal(keys[5], (batch, input_size), jnp.float32)

    # Pure-JAX reference (same math as the PyTorch module: ReLU on every layer).
    ref = x
    for w, b in params:
        ref = jnp.maximum(ref @ w + b, 0.0)

    # f32-operand path: exact-precision correctness check.
    params_f32 = prepare_params(params, compute_dtype=jnp.float32)
    out_f32 = jax.block_until_ready(rpe_model_forward(x, params_f32))
    assert out_f32.shape == (batch, output_size)
    assert jnp.allclose(out_f32, ref, atol=1e-5, rtol=1e-5)

    # bf16-operand path (MXU-native on v5e/v6e/v7x): loose-tolerance check.
    params_bf16 = prepare_params(params, compute_dtype=jnp.bfloat16)
    out_bf16 = jax.block_until_ready(rpe_model_forward(x, params_bf16))
    assert out_bf16.shape == (batch, output_size)
    assert jnp.allclose(out_bf16, ref, atol=1e-1, rtol=1e-1)

    print("KERNEL_OK")
</pallas_src>

<mosaic_0001>
module attributes {stable_mosaic.version = 11 : i64} {
  func.func @mlp_kernel(%arg0: i32, %arg1: memref<24x16xf32, #tpu.memory_space<vmem>>, %arg2: memref<16x32xf32, #tpu.memory_space<vmem>>, %arg3: memref<1x32xf32, #tpu.memory_space<vmem>>, %arg4: memref<32x64xf32, #tpu.memory_space<vmem>>, %arg5: memref<1x64xf32, #tpu.memory_space<vmem>>, %arg6: memref<64x128xf32, #tpu.memory_space<vmem>>, %arg7: memref<1x128xf32, #tpu.memory_space<vmem>>, %arg8: memref<128x32xf32, #tpu.memory_space<vmem>>, %arg9: memref<1x32xf32, #tpu.memory_space<vmem>>, %arg10: memref<32x8xf32, #tpu.memory_space<vmem>>, %arg11: memref<1x8xf32, #tpu.memory_space<vmem>>, %arg12: memref<24x8xf32, #tpu.memory_space<vmem>>) attributes {dimension_semantics = [#tpu.dimension_semantics<parallel>], iteration_bounds = array<i64: 2>, scalar_prefetch = 0 : i64, scratch_operands = 0 : i64, tpu.core_type = #tpu.core_type<tc>, window_params = [{transform_indices = @transform_0, window_bounds = array<i64: 24, 16>}, {pipeline_mode = #tpu.pipeline_mode<synchronous>, transform_indices = @transform_1, window_bounds = array<i64: 16, 32>}, {pipeline_mode = #tpu.pipeline_mode<synchronous>, transform_indices = @transform_2, window_bounds = array<i64: 1, 32>}, {pipeline_mode = #tpu.pipeline_mode<synchronous>, transform_indices = @transform_3, window_bounds = array<i64: 32, 64>}, {pipeline_mode = #tpu.pipeline_mode<synchronous>, transform_indices = @transform_4, window_bounds = array<i64: 1, 64>}, {pipeline_mode = #tpu.pipeline_mode<synchronous>, transform_indices = @transform_5, window_bounds = array<i64: 64, 128>}, {pipeline_mode = #tpu.pipeline_mode<synchronous>, transform_indices = @transform_6, window_bounds = array<i64: 1, 128>}, {pipeline_mode = #tpu.pipeline_mode<synchronous>, transform_indices = @transform_7, window_bounds = array<i64: 128, 32>}, {pipeline_mode = #tpu.pipeline_mode<synchronous>, transform_indices = @transform_8, window_bounds = array<i64: 1, 32>}, {pipeline_mode = #tpu.pipeline_mode<synchronous>, transform_indices = @transform_9, window_bounds = array<i64: 32, 8>}, {pipeline_mode = #tpu.pipeline_mode<synchronous>, transform_indices = @transform_10, window_bounds = array<i64: 1, 8>}, {transform_indices = @transform_11, window_bounds = array<i64: 24, 8>}]} {
    %c0 = arith.constant 0 : index
    %c0_0 = arith.constant 0 : index
    %0 = vector.load %arg1[%c0, %c0_0] : memref<24x16xf32, #tpu.memory_space<vmem>>, vector<24x16xf32>
    %c0_1 = arith.constant 0 : index
    %c0_2 = arith.constant 0 : index
    %1 = vector.load %arg2[%c0_1, %c0_2] : memref<16x32xf32, #tpu.memory_space<vmem>>, vector<16x32xf32>
    %cst = arith.constant dense<0.000000e+00> : vector<24x32xf32>
    %2 = tpu.matmul %0, %1, %cst {dimension_numbers = #tpu.dot_dimension_numbers<[1], [0], [0], [1], [0, 0, 1, 1], [], []>} : vector<24x16xf32>, vector<16x32xf32>, vector<24x32xf32> -> vector<24x32xf32>
    %c0_3 = arith.constant 0 : index
    %c0_4 = arith.constant 0 : index
    %3 = vector.load %arg3[%c0_3, %c0_4] : memref<1x32xf32, #tpu.memory_space<vmem>>, vector<1x32xf32>
    %4 = vector.broadcast %3 : vector<1x32xf32> to vector<24x32xf32>
    %5 = arith.addf %2, %4 : vector<24x32xf32>
    %cst_5 = arith.constant 0.000000e+00 : f32
    %6 = vector.broadcast %cst_5 : f32 to vector<24x32xf32>
    %7 = arith.maximumf %5, %6 : vector<24x32xf32>
    %c0_6 = arith.constant 0 : index
    %c0_7 = arith.constant 0 : index
    %8 = vector.load %arg4[%c0_6, %c0_7] : memref<32x64xf32, #tpu.memory_space<vmem>>, vector<32x64xf32>
    %cst_8 = arith.constant dense<0.000000e+00> : vector<24x64xf32>
    %9 = tpu.matmul %7, %8, %cst_8 {dimension_numbers = #tpu.dot_dimension_numbers<[1], [0], [0], [1], [0, 0, 1, 1], [], []>} : vector<24x32xf32>, vector<32x64xf32>, vector<24x64xf32> -> vector<24x64xf32>
    %c0_9 = arith.constant 0 : index
    %c0_10 = arith.constant 0 : index
    %10 = vector.load %arg5[%c0_9, %c0_10] : memref<1x64xf32, #tpu.memory_space<vmem>>, vector<1x64xf32>
    %11 = vector.broadcast %10 : vector<1x64xf32> to vector<24x64xf32>
    %12 = arith.addf %9, %11 : vector<24x64xf32>
    %cst_11 = arith.constant 0.000000e+00 : f32
    %13 = vector.broadcast %cst_11 : f32 to vector<24x64xf32>
    %14 = arith.maximumf %12, %13 : vector<24x64xf32>
    %c0_12 = arith.constant 0 : index
    %c0_13 = arith.constant 0 : index
    %15 = vector.load %arg6[%c0_12, %c0_13] : memref<64x128xf32, #tpu.memory_space<vmem>>, vector<64x128xf32>
    %cst_14 = arith.constant dense<0.000000e+00> : vector<24x128xf32>
    %16 = tpu.matmul %14, %15, %cst_14 {dimension_numbers = #tpu.dot_dimension_numbers<[1], [0], [0], [1], [0, 0, 1, 1], [], []>} : vector<24x64xf32>, vector<64x128xf32>, vector<24x128xf32> -> vector<24x128xf32>
    %c0_15 = arith.constant 0 : index
    %c0_16 = arith.constant 0 : index
    %17 = vector.load %arg7[%c0_15, %c0_16] : memref<1x128xf32, #tpu.memory_space<vmem>>, vector<1x128xf32>
    %18 = vector.broadcast %17 : vector<1x128xf32> to vector<24x128xf32>
    %19 = arith.addf %16, %18 : vector<24x128xf32>
    %cst_17 = arith.constant 0.000000e+00 : f32
    %20 = vector.broadcast %cst_17 : f32 to vector<24x128xf32>
    %21 = arith.maximumf %19, %20 : vector<24x128xf32>
    %c0_18 = arith.constant 0 : index
    %c0_19 = arith.constant 0 : index
    %22 = vector.load %arg8[%c0_18, %c0_19] : memref<128x32xf32, #tpu.memory_space<vmem>>, vector<128x32xf32>
    %cst_20 = arith.constant dense<0.000000e+00> : vector<24x32xf32>
    %23 = tpu.matmul %21, %22, %cst_20 {dimension_numbers = #tpu.dot_dimension_numbers<[1], [0], [0], [1], [0, 0, 1, 1], [], []>} : vector<24x128xf32>, vector<128x32xf32>, vector<24x32xf32> -> vector<24x32xf32>
    %c0_21 = arith.constant 0 : index
    %c0_22 = arith.constant 0 : index
    %24 = vector.load %arg9[%c0_21, %c0_22] : memref<1x32xf32, #tpu.memory_space<vmem>>, vector<1x32xf32>
    %25 = vector.broadcast %24 : vector<1x32xf32> to vector<24x32xf32>
    %26 = arith.addf %23, %25 : vector<24x32xf32>
    %cst_23 = arith.constant 0.000000e+00 : f32
    %27 = vector.broadcast %cst_23 : f32 to vector<24x32xf32>
    %28 = arith.maximumf %26, %27 : vector<24x32xf32>
    %c0_24 = arith.constant 0 : index
    %c0_25 = arith.constant 0 : index
    %29 = vector.load %arg10[%c0_24, %c0_25] : memref<32x8xf32, #tpu.memory_space<vmem>>, vector<32x8xf32>
    %cst_26 = arith.constant dense<0.000000e+00> : vector<24x8xf32>
    %30 = tpu.matmul %28, %29, %cst_26 {dimension_numbers = #tpu.dot_dimension_numbers<[1], [0], [0], [1], [0, 0, 1, 1], [], []>} : vector<24x32xf32>, vector<32x8xf32>, vector<24x8xf32> -> vector<24x8xf32>
    %c0_27 = arith.constant 0 : index
    %c0_28 = arith.constant 0 : index
    %31 = vector.load %arg11[%c0_27, %c0_28] : memref<1x8xf32, #tpu.memory_space<vmem>>, vector<1x8xf32>
    %32 = vector.broadcast %31 : vector<1x8xf32> to vector<24x8xf32>
    %33 = arith.addf %30, %32 : vector<24x8xf32>
    %cst_29 = arith.constant 0.000000e+00 : f32
    %34 = vector.broadcast %cst_29 : f32 to vector<24x8xf32>
    %35 = arith.maximumf %33, %34 : vector<24x8xf32>
    %c0_30 = arith.constant 0 : index
    %c0_31 = arith.constant 0 : index
    %36 = vector.load %arg12[%c0_30, %c0_31] : memref<24x8xf32, #tpu.memory_space<vmem>>, vector<24x8xf32>
    tpu.vector_store %arg12[%c0_30, %c0_31], %35 {strides = array<i32>} : memref<24x8xf32, #tpu.memory_space<vmem>>, vector<24x8xf32>,
    return
  }
  func.func @transform_0(%arg0: i32) -> (i32, i32) {
    %c0_i32 = arith.constant 0 : i32
    %c0_i32_0 = arith.constant 0 : i32
    return %arg0, %c0_i32 : i32, i32
  }
  func.func @transform_1(%arg0: i32) -> (i32, i32) {
    %c0_i32 = arith.constant 0 : i32
    %c0_i32_0 = arith.constant 0 : i32
    %c0_i32_1 = arith.constant 0 : i32
    return %c0_i32, %c0_i32_0 : i32, i32
  }
  func.func @transform_2(%arg0: i32) -> (i32, i32) {
    %c0_i32 = arith.constant 0 : i32
    %c0_i32_0 = arith.constant 0 : i32
    %c0_i32_1 = arith.constant 0 : i32
    return %c0_i32, %c0_i32_0 : i32, i32
  }
  func.func @transform_3(%arg0: i32) -> (i32, i32) {
    %c0_i32 = arith.constant 0 : i32
    %c0_i32_0 = arith.constant 0 : i32
    %c0_i32_1 = arith.constant 0 : i32
    return %c0_i32, %c0_i32_0 : i32, i32
  }
  func.func @transform_4(%arg0: i32) -> (i32, i32) {
    %c0_i32 = arith.constant 0 : i32
    %c0_i32_0 = arith.constant 0 : i32
    %c0_i32_1 = arith.constant 0 : i32
    return %c0_i32, %c0_i32_0 : i32, i32
  }
  func.func @transform_5(%arg0: i32) -> (i32, i32) {
    %c0_i32 = arith.constant 0 : i32
    %c0_i32_0 = arith.constant 0 : i32
    %c0_i32_1 = arith.constant 0 : i32
    return %c0_i32, %c0_i32_0 : i32, i32
  }
  func.func @transform_6(%arg0: i32) -> (i32, i32) {
    %c0_i32 = arith.constant 0 : i32
    %c0_i32_0 = arith.constant 0 : i32
    %c0_i32_1 = arith.constant 0 : i32
    return %c0_i32, %c0_i32_0 : i32, i32
  }
  func.func @transform_7(%arg0: i32) -> (i32, i32) {
    %c0_i32 = arith.constant 0 : i32
    %c0_i32_0 = arith.constant 0 : i32
    %c0_i32_1 = arith.constant 0 : i32
    return %c0_i32, %c0_i32_0 : i32, i32
  }
  func.func @transform_8(%arg0: i32) -> (i32, i32) {
    %c0_i32 = arith.constant 0 : i32
    %c0_i32_0 = arith.constant 0 : i32
    %c0_i32_1 = arith.constant 0 : i32
    return %c0_i32, %c0_i32_0 : i32, i32
  }
  func.func @transform_9(%arg0: i32) -> (i32, i32) {
    %c0_i32 = arith.constant 0 : i32
    %c0_i32_0 = arith.constant 0 : i32
    %c0_i32_1 = arith.constant 0 : i32
    return %c0_i32, %c0_i32_0 : i32, i32
  }
  func.func @transform_10(%arg0: i32) -> (i32, i32) {
    %c0_i32 = arith.constant 0 : i32
    %c0_i32_0 = arith.constant 0 : i32
    %c0_i32_1 = arith.constant 0 : i32
    return %c0_i32, %c0_i32_0 : i32, i32
  }
  func.func @transform_11(%arg0: i32) -> (i32, i32) {
    %c0_i32 = arith.constant 0 : i32
    %c0_i32_0 = arith.constant 0 : i32
    return %arg0, %c0_i32 : i32, i32
  }
}

</mosaic_0001>

<llo_original>
// kernel: tpu_custom_call.1
$region0: #{tpu_custom_call.1}
  #allocation0 [shape = 'u32[]', space=smem, size = 0x4, offset = 0x4, fixed_abs, tag = 'smem constant byte address 0x4 - core index']
  #allocation1 [shape = 'u32[144,128]{1,0:T(1,128)}', space=vmem, size = 0x12000, scoped, tag = 'internal scratch']
  %s0 = inlined_call_operand.vmem [shape: f32[48,16], index: 0, kind: input, shape index: {}]
  %s1 = inlined_call_operand.vmem [shape: f32[16,32], index: 1, kind: input, shape index: {}]
  %s2 = inlined_call_operand.vmem [shape: f32[1,32], index: 2, kind: input, shape index: {}]
  %s3 = inlined_call_operand.vmem [shape: f32[32,64], index: 3, kind: input, shape index: {}]
  %s4 = inlined_call_operand.vmem [shape: f32[1,64], index: 4, kind: input, shape index: {}]
  %s5 = inlined_call_operand.vmem [shape: f32[64,128], index: 5, kind: input, shape index: {}]
  %s6 = inlined_call_operand.vmem [shape: f32[1,128], index: 6, kind: input, shape index: {}]
  %s7 = inlined_call_operand.vmem [shape: f32[128,32], index: 7, kind: input, shape index: {}]
  %s8 = inlined_call_operand.vmem [shape: f32[1,32], index: 8, kind: input, shape index: {}]
  %s9 = inlined_call_operand.vmem [shape: f32[32,8], index: 9, kind: input, shape index: {}]
  %s10 = inlined_call_operand.vmem [shape: f32[1,8], index: 10, kind: input, shape index: {}]
  %s11 = inlined_call_operand.vmem [shape: f32[48,8], index: 11, kind: output, shape index: {}]
  %s12 = sld [smem:[#allocation0]]
  $region77: #{tpu_custom_call.1} parent=0
    _
  %s14 = ssub.s32 1, %s12
  %s15 = scalar_select 0, %s14, %s12
  loop: start=0, step=1, limit=4
  $region2: #{tpu_custom_call.1} parent=0 // loop_pre_header
    _
  $region3: #{tpu_custom_call.1} parent=0 // loop_header
    %s17 = sphi 0, %s21
    %p18 = scmp.ge.s32.totalorder %s17, 4
    %s27 = sphi 0, %s29
    %s30 = sphi 0, %s27
    %s31 = sphi 0, %s30
    %s47 = sphi 0, %s31
    %s51 = sphi 0, %s51
    %s53 = sphi 0, %s51
    %s54 = sphi 0, %s53
    %s68 = sphi 0, %s54
    %s72 = sphi 0, %s72
    %s74 = sphi 0, %s72
    %s75 = sphi 0, %s74
    %s89 = sphi 0, %s75
    %s93 = sphi 0, %s93
    %s95 = sphi 0, %s93
    %s96 = sphi 0, %s95
    %s110 = sphi 0, %s96
    %s114 = sphi 0, %s114
    %s116 = sphi 0, %s114
    %s117 = sphi 0, %s116
    %s131 = sphi 0, %s117
    %s135 = sphi 0, %s135
    %s137 = sphi 0, %s135
    %s138 = sphi 0, %s137
    %s152 = sphi 0, %s138
    %s156 = sphi 0, %s156
    %s158 = sphi 0, %s156
    %s159 = sphi 0, %s158
    %s173 = sphi 0, %s159
    %s177 = sphi 0, %s177
    %s179 = sphi 0, %s177
    %s180 = sphi 0, %s179
    %s194 = sphi 0, %s180
    %s198 = sphi 0, %s198
    %s200 = sphi 0, %s198
    %s201 = sphi 0, %s200
    %s215 = sphi 0, %s201
    %s219 = sphi 0, %s219
    %s221 = sphi 0, %s219
    %s222 = sphi 0, %s221
    %s236 = sphi 0, %s222
    %s240 = sphi 0, %s240
    %s242 = sphi 0, %s240
    %s243 = sphi 0, %s242
    %s257 = sphi 0, %s243
    %s263 = sphi 0, %s265
    %s266 = sphi 0, %s263
    %s267 = sphi 0, %s266
    %s283 = sphi 0, %s267
  $region4: #{tpu_custom_call.1} parent=0 // loop_header_branch
    %20 = sbr.rel (%p18) target = $region8
  $region5: #{tpu_custom_call.1} parent=0 // loop_body
    %s22 = ssub.s32 %s17, 1
    %s23 = ssub.s32 %s17, 2
    %s24 = sadd.s32 %s17, 1
    %s25 = ssub.s32 %s17, %s24
    %p26 = scmp.eq.s32.totalorder %s25, 0
    %s28 = sadd.s32 %s27, 1
    %s29 = scalar_select %p26, %s27, %s28
    %p32 = pneg %p26
    %p33 = scmp.eq.s32.totalorder %s17, 1
    %p34 = por %p32, %p33
    %p35 = scmp.ne.s32.totalorder %s27, %s30
    %p36 = scmp.eq.s32.totalorder %s17, 0
    %p37 = por %p35, %p36
    %p38 = scmp.ne.s32.totalorder %s27, %s30
    %p39 = scmp.eq.s32.totalorder %s22, 1
    %p40 = por %p38, %p39
    %p41 = scmp.ne.s32.totalorder %s30, %s31
    %p42 = scmp.eq.s32.totalorder %s22, 0
    %p43 = por %p41, %p42
    %p44 = scmp.ne.s32.totalorder %s30, %s31
    %p45 = scmp.eq.s32.totalorder %s23, 1
    %p46 = por %p44, %p45
    %p48 = scmp.ne.s32.totalorder %s31, %s47
    %p49 = scmp.eq.s32.totalorder %s23, 0
    %p50 = por %p48, %p49
    %s52 = sadd.s32 %s51, 1
    %p55 = scmp.eq.s32.totalorder %s17, 1
    %p56 = scmp.ne.s32.totalorder %s51, %s53
    %p57 = scmp.eq.s32.totalorder %s17, 0
    %p58 = por %p56, %p57
    %p59 = scmp.ne.s32.totalorder %s51, %s53
    %p60 = scmp.eq.s32.totalorder %s22, 1
    %p61 = por %p59, %p60
    %p62 = scmp.ne.s32.totalorder %s53, %s54
    %p63 = scmp.eq.s32.totalorder %s22, 0
    %p64 = por %p62, %p63
    %p65 = scmp.ne.s32.totalorder %s53, %s54
    %p66 = scmp.eq.s32.totalorder %s23, 1
    %p67 = por %p65, %p66
    %p69 = scmp.ne.s32.totalorder %s54, %s68
    %p70 = scmp.eq.s32.totalorder %s23, 0
    %p71 = por %p69, %p70
    %s73 = sadd.s32 %s72, 1
    %p76 = scmp.eq.s32.totalorder %s17, 1
    %p77 = scmp.ne.s32.totalorder %s72, %s74
    %p78 = scmp.eq.s32.totalorder %s17, 0
    %p79 = por %p77, %p78
    %p80 = scmp.ne.s32.totalorder %s72, %s74
    %p81 = scmp.eq.s32.totalorder %s22, 1
    %p82 = por %p80, %p81
    %p83 = scmp.ne.s32.totalorder %s74, %s75
    %p84 = scmp.eq.s32.totalorder %s22, 0
    %p85 = por %p83, %p84
    %p86 = scmp.ne.s32.totalorder %s74, %s75
    %p87 = scmp.eq.s32.totalorder %s23, 1
    %p88 = por %p86, %p87
    %p90 = scmp.ne.s32.totalorder %s75, %s89
    %p91 = scmp.eq.s32.totalorder %s23, 0
    %p92 = por %p90, %p91
    %s94 = sadd.s32 %s93, 1
    %p97 = scmp.eq.s32.totalorder %s17, 1
    %p98 = scmp.ne.s32.totalorder %s93, %s95
    %p99 = scmp.eq.s32.totalorder %s17, 0
    %p100 = por %p98, %p99
    %p101 = scmp.ne.s32.totalorder %s93, %s95
    %p102 = scmp.eq.s32.totalorder %s22, 1
    %p103 = por %p101, %p102
    %p104 = scmp.ne.s32.totalorder %s95, %s96
    %p105 = scmp.eq.s32.totalorder %s22, 0
    %p106 = por %p104, %p105
    %p107 = scmp.ne.s32.totalorder %s95, %s96
    %p108 = scmp.eq.s32.totalorder %s23, 1
    %p109 = por %p107, %p108
    %p111 = scmp.ne.s32.totalorder %s96, %s110
    %p112 = scmp.eq.s32.totalorder %s23, 0
    %p113 = por %p111, %p112
    %s115 = sadd.s32 %s114, 1
    %p118 = scmp.eq.s32.totalorder %s17, 1
    %p119 = scmp.ne.s32.totalorder %s114, %s116
    %p120 = scmp.eq.s32.totalorder %s17, 0
    %p121 = por %p119, %p120
    %p122 = scmp.ne.s32.totalorder %s114, %s116
    %p123 = scmp.eq.s32.totalorder %s22, 1
    %p124 = por %p122, %p123
    %p125 = scmp.ne.s32.totalorder %s116, %s117
    %p126 = scmp.eq.s32.totalorder %s22, 0
    %p127 = por %p125, %p126
    %p128 = scmp.ne.s32.totalorder %s116, %s117
    %p129 = scmp.eq.s32.totalorder %s23, 1
    %p130 = por %p128, %p129
    %p132 = scmp.ne.s32.totalorder %s117, %s131
    %p133 = scmp.eq.s32.totalorder %s23, 0
    %p134 = por %p132, %p133
    %s136 = sadd.s32 %s135, 1
    %p139 = scmp.eq.s32.totalorder %s17, 1
    %p140 = scmp.ne.s32.totalorder %s135, %s137
    %p141 = scmp.eq.s32.totalorder %s17, 0
    %p142 = por %p140, %p141
    %p143 = scmp.ne.s32.totalorder %s135, %s137
    %p144 = scmp.eq.s32.totalorder %s22, 1
    %p145 = por %p143, %p144
    %p146 = scmp.ne.s32.totalorder %s137, %s138
    %p147 = scmp.eq.s32.totalorder %s22, 0
    %p148 = por %p146, %p147
    %p149 = scmp.ne.s32.totalorder %s137, %s138
    %p150 = scmp.eq.s32.totalorder %s23, 1
    %p151 = por %p149, %p150
    %p153 = scmp.ne.s32.totalorder %s138, %s152
    %p154 = scmp.eq.s32.totalorder %s23, 0
    %p155 = por %p153, %p154
    %s157 = sadd.s32 %s156, 1
    %p160 = scmp.eq.s32.totalorder %s17, 1
    %p161 = scmp.ne.s32.totalorder %s156, %s158
    %p162 = scmp.eq.s32.totalorder %s17, 0
    %p163 = por %p161, %p162
    %p164 = scmp.ne.s32.totalorder %s156, %s158
    %p165 = scmp.eq.s32.totalorder %s22, 1
    %p166 = por %p164, %p165
    %p167 = scmp.ne.s32.totalorder %s158, %s159
    %p168 = scmp.eq.s32.totalorder %s22, 0
    %p169 = por %p167, %p168
    %p170 = scmp.ne.s32.totalorder %s158, %s159
    %p171 = scmp.eq.s32.totalorder %s23, 1
    %p172 = por %p170, %p171
    %p174 = scmp.ne.s32.totalorder %s159, %s173
    %p175 = scmp.eq.s32.totalorder %s23, 0
    %p176 = por %p174, %p175
    %s178 = sadd.s32 %s177, 1
    %p181 = scmp.eq.s32.totalorder %s17, 1
    %p182 = scmp.ne.s32.totalorder %s177, %s179
    %p183 = scmp.eq.s32.totalorder %s17, 0
    %p184 = por %p182, %p183
    %p185 = scmp.ne.s32.totalorder %s177, %s179
    %p186 = scmp.eq.s32.totalorder %s22, 1
    %p187 = por %p185, %p186
    %p188 = scmp.ne.s32.totalorder %s179, %s180
    %p189 = scmp.eq.s32.totalorder %s22, 0
    %p190 = por %p188, %p189
    %p191 = scmp.ne.s32.totalorder %s179, %s180
    %p192 = scmp.eq.s32.totalorder %s23, 1
    %p193 = por %p191, %p192
    %p195 = scmp.ne.s32.totalorder %s180, %s194
    %p196 = scmp.eq.s32.totalorder %s23, 0
    %p197 = por %p195, %p196
    %s199 = sadd.s32 %s198, 1
    %p202 = scmp.eq.s32.totalorder %s17, 1
    %p203 = scmp.ne.s32.totalorder %s198, %s200
    %p204 = scmp.eq.s32.totalorder %s17, 0
    %p205 = por %p203, %p204
    %p206 = scmp.ne.s32.totalorder %s198, %s200
    %p207 = scmp.eq.s32.totalorder %s22, 1
    %p208 = por %p206, %p207
    %p209 = scmp.ne.s32.totalorder %s200, %s201
    %p210 = scmp.eq.s32.totalorder %s22, 0
    %p211 = por %p209, %p210
    %p212 = scmp.ne.s32.totalorder %s200, %s201
    %p213 = scmp.eq.s32.totalorder %s23, 1
    %p214 = por %p212, %p213
    %p216 = scmp.ne.s32.totalorder %s201, %s215
    %p217 = scmp.eq.s32.totalorder %s23, 0
    %p218 = por %p216, %p217
    %s220 = sadd.s32 %s219, 1
    %p223 = scmp.eq.s32.totalorder %s17, 1
    %p224 = scmp.ne.s32.totalorder %s219, %s221
    %p225 = scmp.eq.s32.totalorder %s17, 0
    %p226 = por %p224, %p225
    %p227 = scmp.ne.s32.totalorder %s219, %s221
    %p228 = scmp.eq.s32.totalorder %s22, 1
    %p229 = por %p227, %p228
    %p230 = scmp.ne.s32.totalorder %s221, %s222
    %p231 = scmp.eq.s32.totalorder %s22, 0
    %p232 = por %p230, %p231
    %p233 = scmp.ne.s32.totalorder %s221, %s222
    %p234 = scmp.eq.s32.totalorder %s23, 1
    %p235 = por %p233, %p234
    %p237 = scmp.ne.s32.totalorder %s222, %s236
    %p238 = scmp.eq.s32.totalorder %s23, 0
    %p239 = por %p237, %p238
    %s241 = sadd.s32 %s240, 1
    %p244 = scmp.eq.s32.totalorder %s17, 1
    %p245 = scmp.ne.s32.totalorder %s240, %s242
    %p246 = scmp.eq.s32.totalorder %s17, 0
    %p247 = por %p245, %p246
    %p248 = scmp.ne.s32.totalorder %s240, %s242
    %p249 = scmp.eq.s32.totalorder %s22, 1
    %p250 = por %p248, %p249
    %p251 = scmp.ne.s32.totalorder %s242, %s243
    %p252 = scmp.eq.s32.totalorder %s22, 0
    %p253 = por %p251, %p252
    %p254 = scmp.ne.s32.totalorder %s242, %s243
    %p255 = scmp.eq.s32.totalorder %s23, 1
    %p256 = por %p254, %p255
    %p258 = scmp.ne.s32.totalorder %s243, %s257
    %p259 = scmp.eq.s32.totalorder %s23, 0
    %p260 = por %p258, %p259
    %s261 = ssub.s32 %s17, %s24
    %p262 = scmp.eq.s32.totalorder %s261, 0
    %s264 = sadd.s32 %s263, 1
    %s265 = scalar_select %p262, %s263, %s264
    %p268 = pneg %p262
    %p269 = scmp.eq.s32.totalorder %s17, 1
    %p270 = por %p268, %p269
    %p271 = scmp.ne.s32.totalorder %s263, %s266
    %p272 = scmp.eq.s32.totalorder %s17, 0
    %p273 = por %p271, %p272
    %p274 = scmp.ne.s32.totalorder %s263, %s266
    %p275 = scmp.eq.s32.totalorder %s22, 1
    %p276 = por %p274, %p275
    %p277 = scmp.ne.s32.totalorder %s266, %s267
    %p278 = scmp.eq.s32.totalorder %s22, 0
    %p279 = por %p277, %p278
    %p280 = scmp.ne.s32.totalorder %s266, %s267
    %p281 = scmp.eq.s32.totalorder %s23, 1
    %p282 = por %p280, %p281
    %p284 = scmp.ne.s32.totalorder %s267, %s283
    %p285 = scmp.eq.s32.totalorder %s23, 0
    %p286 = por %p284, %p285
    %p287 = scmp.le.s32.totalorder 1, %s17
    %p288 = scmp.lt.s32.totalorder %s17, 3
    %p289 = pnand %p287, %p288
    %p290 = pneg %p289
    // Predicated region
    $region9: #{tpu_custom_call.1} parent=5 // pred_check
      _
    $region10: #{tpu_custom_call.1} parent=5 // pred_check_branch
      %292 = sbr.rel (%p289) target = $region12
    $region11: #{tpu_custom_call.1} parent=5 // pred_region
      %s293 = ssub.s32 %s17, 1
      // Predicated region
      $region13: #{tpu_custom_call.1} parent=11 // pred_check
        %p294 = pneg %p64
      $region14: #{tpu_custom_call.1} parent=11 // pred_check_branch
        %296 = sbr.rel (%p294) target = $region16
      $region15: #{tpu_custom_call.1} parent=11 // pred_region
        _
      $region16: #{tpu_custom_call.1} parent=11 // pred_fallthru
        _
      // Predicated region
      $region17: #{tpu_custom_call.1} parent=11 // pred_check
        %p297 = pneg %p85
      $region18: #{tpu_custom_call.1} parent=11 // pred_check_branch
        %299 = sbr.rel (%p297) target = $region20
      $region19: #{tpu_custom_call.1} parent=11 // pred_region
        _
      $region20: #{tpu_custom_call.1} parent=11 // pred_fallthru
        _
      // Predicated region
      $region21: #{tpu_custom_call.1} parent=11 // pred_check
        %p300 = pneg %p106
      $region22: #{tpu_custom_call.1} parent=11 // pred_check_branch
        %302 = sbr.rel (%p300) target = $region24
      $region23: #{tpu_custom_call.1} parent=11 // pred_region
        _
      $region24: #{tpu_custom_call.1} parent=11 // pred_fallthru
        _
      // Predicated region
      $region25: #{tpu_custom_call.1} parent=11 // pred_check
        %p303 = pneg %p127
      $region26: #{tpu_custom_call.1} parent=11 // pred_check_branch
        %305 = sbr.rel (%p303) target = $region28
      $region27: #{tpu_custom_call.1} parent=11 // pred_region
        _
      $region28: #{tpu_custom_call.1} parent=11 // pred_fallthru
        _
      // Predicated region
      $region29: #{tpu_custom_call.1} parent=11 // pred_check
        %p306 = pneg %p148
      $region30: #{tpu_custom_call.1} parent=11 // pred_check_branch
        %308 = sbr.rel (%p306) target = $region32
      $region31: #{tpu_custom_call.1} parent=11 // pred_region
        _
      $region32: #{tpu_custom_call.1} parent=11 // pred_fallthru
        _
      // Predicated region
      $region33: #{tpu_custom_call.1} parent=11 // pred_check
        %p309 = pneg %p169
      $region34: #{tpu_custom_call.1} parent=11 // pred_check_branch
        %311 = sbr.rel (%p309) target = $region36
      $region35: #{tpu_custom_call.1} parent=11 // pred_region
        _
      $region36: #{tpu_custom_call.1} parent=11 // pred_fallthru
        _
      // Predicated region
      $region37: #{tpu_custom_call.1} parent=11 // pred_check
        %p312 = pneg %p190
      $region38: #{tpu_custom_call.1} parent=11 // pred_check_branch
        %314 = sbr.rel (%p312) target = $region40
      $region39: #{tpu_custom_call.1} parent=11 // pred_region
        _
      $region40: #{tpu_custom_call.1} parent=11 // pred_fallthru
        _
      // Predicated region
      $region41: #{tpu_custom_call.1} parent=11 // pred_check
        %p315 = pneg %p211
      $region42: #{tpu_custom_call.1} parent=11 // pred_check_branch
        %317 = sbr.rel (%p315) target = $region44
      $region43: #{tpu_custom_call.1} parent=11 // pred_region
        _
      $region44: #{tpu_custom_call.1} parent=11 // pred_fallthru
        _
      // Predicated region
      $region45: #{tpu_custom_call.1} parent=11 // pred_check
        %p318 = pneg %p232
      $region46: #{tpu_custom_call.1} parent=11 // pred_check_branch
        %320 = sbr.rel (%p318) target = $region48
      $region47: #{tpu_custom_call.1} parent=11 // pred_region
        _
      $region48: #{tpu_custom_call.1} parent=11 // pred_fallthru
        _
      // Predicated region
      $region49: #{tpu_custom_call.1} parent=11 // pred_check
        %p321 = pneg %p253
      $region50: #{tpu_custom_call.1} parent=11 // pred_check_branch
        %323 = sbr.rel (%p321) target = $region52
      $region51: #{tpu_custom_call.1} parent=11 // pred_region
        _
      $region52: #{tpu_custom_call.1} parent=11 // pred_fallthru
        _
    $region12: #{tpu_custom_call.1} parent=5 // pred_fallthru
      _
    %p324 = scmp.lt.s32.totalorder %s17, 2
    // Predicated region
    $region53: #{tpu_custom_call.1} parent=5 // pred_check
      %p325 = pneg %p324
    $region54: #{tpu_custom_call.1} parent=5 // pred_check_branch
      %327 = sbr.rel (%p325) target = $region56
    $region55: #{tpu_custom_call.1} parent=5 // pred_region
      // Predicated region
      $region57: #{tpu_custom_call.1} parent=55 // pred_check
        %p328 = pneg %p37
      $region58: #{tpu_custom_call.1} parent=55 // pred_check_branch
        %330 = sbr.rel (%p328) target = $region60
      $region59: #{tpu_custom_call.1} parent=55 // pred_region
        %s331 = smul.u32 3, %s17
        %p332 = scmp.lt.s32.totalorder %s331, 5
        %s333 = scalar_select %p332, %s331, 5
        %s334 = smul.addr %s333, 8
        %s335 = scalar_lea.vmem %s0, %s334
        %s336 = smul.u32 3, %s17
      $region60: #{tpu_custom_call.1} parent=55 // pred_fallthru
        _
    $region56: #{tpu_custom_call.1} parent=5 // pred_fallthru
      _
    %p337 = scmp.le.s32.totalorder 1, %s17
    %p338 = scmp.lt.s32.totalorder %s17, 3
    %p339 = pnand %p337, %p338
    %p340 = pneg %p339
    // Predicated region
    $region61: #{tpu_custom_call.1} parent=5 // pred_check
      _
    $region62: #{tpu_custom_call.1} parent=5 // pred_check_branch
      %342 = sbr.rel (%p339) target = $region64
    $region63: #{tpu_custom_call.1} parent=5 // pred_region
      %s343 = ssub.s32 %s17, 1
      %s344 = smul.u32 3, %s22
      %p345 = scmp.lt.s32.totalorder %s344, 5
      %s346 = scalar_select %p345, %s344, 5
      %s347 = smul.addr %s346, 8
      %s348 = scalar_lea.vmem %s0, %s347
      %p349 = pneg %p43
      %p350 = pneg %p40
      %p351 = pneg %p64
      %p352 = pneg %p61
      %p353 = pneg %p85
      %p354 = pneg %p82
      %p355 = pneg %p106
      %p356 = pneg %p103
      %p357 = pneg %p127
      %p358 = pneg %p124
      %p359 = pneg %p148
      %p360 = pneg %p145
      %p361 = pneg %p169
      %p362 = pneg %p166
      %p363 = pneg %p190
      %p364 = pneg %p187
      %p365 = pneg %p211
      %p366 = pneg %p208
      %p367 = pneg %p232
      %p368 = pneg %p229
      %p369 = pneg %p253
      %p370 = pneg %p250
      %p371 = pneg %p279
      %p372 = pneg %p276
      %s373 = smul.u32 3, %s22
      %p374 = scmp.lt.s32.totalorder %s373, 5
      %s375 = scalar_select %p374, %s373, 5
      %s376 = smul.addr %s375, 8
      %s377 = scalar_lea.vmem %s11, %s376
      %s378 = smul.u32 3, %s22
      %p379 = scmp.lt.s32.totalorder %s378, 5
      %s380 = scalar_select %p379, %s378, 5
      %s381 = smul.addr %s380, 8
      %s382 = scalar_lea.vmem %s0, %s381
      %s383 = smul.u32 3, %s22
      %s384 = smul.u32 3, %s22
      %p385 = scmp.lt.s32.totalorder %s384, 5
      %s386 = scalar_select %p385, %s384, 5
      %s387 = smul.addr %s386, 8
      %s388 = scalar_lea.vmem %s11, %s387
      %s389 = smul.u32 3, %s22
      %v390 = vld [vmem:[%s382] sm:$0xff]
      %v391 = vld [vmem:[%s382 + $0x8] sm:$0xff]
      %v392 = vld [vmem:[%s382 + $0x10] sm:$0xff]
      %v393 = vld [vmem:[%s1] sm:$0xff]
      %v394 = vld [vmem:[%s1 + $0x8] sm:$0xff]
      %v395 = vld [vmem:[%s2] sm:$0x1]
      %v397 = vlaneseq
      %v398 = vshrl.u32 %v397, 7
      %v399 = vsub.s32 0, %v398
      %v400 = vrot.slane %v395, %v399
      %vm402 = vcmask 130048
      %v404 = vsel %vm402, %v390, 0
      %v407 = vsel %vm402, %v391, 0
      %v410 = vsel %vm402, %v392, 0
      %412 = vmatprep.subr.mxu0 0.0
      %413 = vmatpush1.msra.mxu0 %v393
      %414 = vmatprep.subr.mxu0 0.0
      %415 = vmatpush1.msra.mxu0 %v394
      %416 = vmatprep.subr.mxu0 0.0
      %417 = vmatpush1.msra.mxu0 0.0
      %418 = vmatprep.subr.mxu0 0.0
      %419 = vmatpush1.msra.mxu0 0.0
      %420 = vmatprep.subr.mxu0 0.0
      %421 = vmatpush1.msra.mxu0 0.0
      %422 = vmatprep.subr.mxu0 0.0
      %423 = vmatpush1.msra.mxu0 0.0
      %424 = vmatprep.subr.mxu0 0.0
      %425 = vmatpush1.msra.mxu0 0.0
      %426 = vmatprep.subr.mxu0 0.0
      %427 = vmatpush1.msra.mxu0 0.0
      %428 = vmatprep.subr.mxu0 0.0
      %429 = vmatpush1.msra.mxu0 0.0
      %430 = vmatprep.subr.mxu0 0.0
      %431 = vmatpush1.msra.mxu0 0.0
      %432 = vmatprep.subr.mxu0 0.0
      %433 = vmatpush1.msra.mxu0 0.0
      %434 = vmatprep.subr.mxu0 0.0
      %435 = vmatpush1.msra.mxu0 0.0
      %436 = vmatprep.subr.mxu0 0.0
      %437 = vmatpush1.msra.mxu0 0.0
      %438 = vmatprep.subr.mxu0 0.0
      %439 = vmatpush1.msra.mxu0 0.0
      %440 = vmatprep.subr.mxu0 0.0
      %441 = vmatpush1.msra.mxu0 0.0
      %442 = vmatprep.subr.mxu0 0.0
      %443 = vmatpush1.msra.mxu0 0.0
      %444 = vmatprep.subr.mxu0 0.0
      %445 = vmatpush1.msra.mxu0 0.0
      %446 = vmatprep.subr.mxu0 0.0
      %447 = vmatpush1.msra.mxu0 0.0
      %448 = vmatprep.subr.mxu0 0.0
      %449 = vmatpush1.msra.mxu0 0.0
      %450 = vmatprep.subr.mxu0 0.0
      %451 = vmatpush1.msra.mxu0 0.0
      %452 = vmatprep.subr.mxu0 0.0
      %453 = vmatpush1.msra.mxu0 0.0
      %454 = vmatprep.subr.mxu0 0.0
      %455 = vmatpush1.msra.mxu0 0.0
      %456 = vmatprep.subr.mxu0 0.0
      %457 = vmatpush1.msra.mxu0 0.0
      %458 = vmatprep.subr.mxu0 0.0
      %459 = vmatpush1.msra.mxu0 0.0
      %460 = vmatprep.subr.mxu0 0.0
      %461 = vmatpush1.msra.mxu0 0.0
      %462 = vmatprep.subr.mxu0 0.0
      %463 = vmatpush1.msra.mxu0 0.0
      %464 = vmatprep.subr.mxu0 0.0
      %465 = vmatpush1.msra.mxu0 0.0
      %466 = vmatprep.subr.mxu0 0.0
      %467 = vmatpush1.msra.mxu0 0.0
      %468 = vmatprep.subr.mxu0 0.0
      %469 = vmatpush1.msra.mxu0 0.0
      %470 = vmatprep.subr.mxu0 0.0
      %471 = vmatpush1.msra.mxu0 0.0
      %472 = vmatprep.subr.mxu0 0.0
      %473 = vmatpush1.msra.mxu0 0.0
      %474 = vmatprep.subr.mxu0 0.0
      %475 = vmatpush1.msra.mxu0 0.0
      %476 = vmatprep.mubr.f32.mxu0 0.0
      %477 = vmatmul.mubr.f32.gmra.mrb[0].mxu0 %v404
      %v478 = vpop.f32.mrb[0].mxu0
      %v479 = vadd.f32 %v400, %v478
      %v480 = vpop.f32.mrb[0].mxu0
      %481 = vmatprep.mubr.f32.mxu0 0.0
      %482 = vmatmul.mubr.f32.gmra.mrb[0].mxu0 %v407
      %v483 = vpop.f32.mrb[0].mxu0
      %v484 = vadd.f32 %v400, %v483
      %v485 = vpop.f32.mrb[0].mxu0
      %486 = vmatprep.mubr.f32.mxu0 0.0
      %487 = vmatmul.mubr.f32.gmra.mrb[0].mxu0 %v410
      %v488 = vpop.f32.mrb[0].mxu0
      %v489 = vadd.f32 %v400, %v488
      %v490 = vpop.f32.mrb[0].mxu0
      %491 = vdwg.mxu0
      %v492 = vmax.f32 %v479, 0.0
      %v493 = vmax.f32 %v484, 0.0
      %v494 = vmax.f32 %v489, 0.0
      %v495 = vld [vmem:[%s3] sm:$0xff]
      %v496 = vld [vmem:[%s3 + $0x8] sm:$0xff]
      %v497 = vld [vmem:[%s3 + $0x10] sm:$0xff]
      %v498 = vld [vmem:[%s3 + $0x18] sm:$0xff]
      %v499 = vld [vmem:[%s4] sm:$0x1]
      %v501 = vlaneseq
      %v502 = vshrl.u32 %v501, 7
      %v503 = vsub.s32 0, %v502
      %v504 = vrot.slane %v499, %v503
      %vm506 = vcmask 261120
      %v508 = vsel %vm506, %v492, 0
      %v511 = vsel %vm506, %v493, 0
      %v514 = vsel %vm506, %v494, 0
      %516 = vmatprep.subr.mxu0 0.0
      %517 = vmatpush1.msra.mxu0 %v495
      %518 = vmatprep.subr.mxu0 0.0
      %519 = vmatpush1.msra.mxu0 %v496
      %520 = vmatprep.subr.mxu0 0.0
      %521 = vmatpush1.msra.mxu0 %v497
      %522 = vmatprep.subr.mxu0 0.0
      %523 = vmatpush1.msra.mxu0 %v498
      %524 = vmatprep.subr.mxu0 0.0
      %525 = vmatpush1.msra.mxu0 0.0
      %526 = vmatprep.subr.mxu0 0.0
      %527 = vmatpush1.msra.mxu0 0.0
      %528 = vmatprep.subr.mxu0 0.0
      %529 = vmatpush1.msra.mxu0 0.0
      %530 = vmatprep.subr.mxu0 0.0
      %531 = vmatpush1.msra.mxu0 0.0
      %532 = vmatprep.subr.mxu0 0.0
      %533 = vmatpush1.msra.mxu0 0.0
      %534 = vmatprep.subr.mxu0 0.0
      %535 = vmatpush1.msra.mxu0 0.0
      %536 = vmatprep.subr.mxu0 0.0
      %537 = vmatpush1.msra.mxu0 0.0
      %538 = vmatprep.subr.mxu0 0.0
      %539 = vmatpush1.msra.mxu0 0.0
      %540 = vmatprep.subr.mxu0 0.0
      %541 = vmatpush1.msra.mxu0 0.0
      %542 = vmatprep.subr.mxu0 0.0
      %543 = vmatpush1.msra.mxu0 0.0
      %544 = vmatprep.subr.mxu0 0.0
      %545 = vmatpush1.msra.mxu0 0.0
      %546 = vmatprep.subr.mxu0 0.0
      %547 = vmatpush1.msra.mxu0 0.0
      %548 = vmatprep.subr.mxu0 0.0
      %549 = vmatpush1.msra.mxu0 0.0
      %550 = vmatprep.subr.mxu0 0.0
      %551 = vmatpush1.msra.mxu0 0.0
      %552 = vmatprep.subr.mxu0 0.0
      %553 = vmatpush1.msra.mxu0 0.0
      %554 = vmatprep.subr.mxu0 0.0
      %555 = vmatpush1.msra.mxu0 0.0
      %556 = vmatprep.subr.mxu0 0.0
      %557 = vmatpush1.msra.mxu0 0.0
      %558 = vmatprep.subr.mxu0 0.0
      %559 = vmatpush1.msra.mxu0 0.0
      %560 = vmatprep.subr.mxu0 0.0
      %561 = vmatpush1.msra.mxu0 0.0
      %562 = vmatprep.subr.mxu0 0.0
      %563 = vmatpush1.msra.mxu0 0.0
      %564 = vmatprep.subr.mxu0 0.0
      %565 = vmatpush1.msra.mxu0 0.0
      %566 = vmatprep.subr.mxu0 0.0
      %567 = vmatpush1.msra.mxu0 0.0
      %568 = vmatprep.subr.mxu0 0.0
      %569 = vmatpush1.msra.mxu0 0.0
      %570 = vmatprep.subr.mxu0 0.0
      %571 = vmatpush1.msra.mxu0 0.0
      %572 = vmatprep.subr.mxu0 0.0
      %573 = vmatpush1.msra.mxu0 0.0
      %574 = vmatprep.subr.mxu0 0.0
      %575 = vmatpush1.msra.mxu0 0.0
      %576 = vmatprep.subr.mxu0 0.0
      %577 = vmatpush1.msra.mxu0 0.0
      %578 = vmatprep.subr.mxu0 0.0
      %579 = vmatpush1.msra.mxu0 0.0
      %580 = vmatprep.mubr.f32.mxu0 0.0
      %581 = vmatmul.mubr.f32.gmra.mrb[0].mxu0 %v508
      %v582 = vpop.f32.mrb[0].mxu0
      %v583 = vadd.f32 %v504, %v582
      %v584 = vpop.f32.mrb[0].mxu0
      %585 = vmatprep.mubr.f32.mxu0 0.0
      %586 = vmatmul.mubr.f32.gmra.mrb[0].mxu0 %v511
      %v587 = vpop.f32.mrb[0].mxu0
      %v588 = vadd.f32 %v504, %v587
      %v589 = vpop.f32.mrb[0].mxu0
      %590 = vmatprep.mubr.f32.mxu0 0.0
      %591 = vmatmul.mubr.f32.gmra.mrb[0].mxu0 %v514
      %v592 = vpop.f32.mrb[0].mxu0
      %v593 = vadd.f32 %v504, %v592
      %v594 = vpop.f32.mrb[0].mxu0
      %595 = vdwg.mxu0
      %v596 = vmax.f32 %v583, 0.0
      %v597 = vmax.f32 %v588, 0.0
      %v598 = vmax.f32 %v593, 0.0
      %v599 = vld [vmem:[%s5] sm:$0xff]
      %v600 = vld [vmem:[%s5 + $0x8] sm:$0xff]
      %v601 = vld [vmem:[%s5 + $0x10] sm:$0xff]
      %v602 = vld [vmem:[%s5 + $0x18] sm:$0xff]
      %v603 = vld [vmem:[%s5 + $0x20] sm:$0xff]
      %v604 = vld [vmem:[%s5 + $0x28] sm:$0xff]
      %v605 = vld [vmem:[%s5 + $0x30] sm:$0xff]
      %v606 = vld [vmem:[%s5 + $0x38] sm:$0xff]
      %v607 = vld [vmem:[%s6] sm:$0x1]
      %v609 = vlaneseq
      %v610 = vshrl.u32 %v609, 7
      %v611 = vsub.s32 0, %v610
      %v612 = vrot.slane %v607, %v611
      %vm614 = vcmask 523264
      %v616 = vsel %vm614, %v596, 0
      %v619 = vsel %vm614, %v597, 0
      %v622 = vsel %vm614, %v598, 0
      %624 = vmatprep.subr.mxu0 0.0
      %625 = vmatpush1.msra.mxu0 %v599
      %626 = vmatprep.subr.mxu0 0.0
      %627 = vmatpush1.msra.mxu0 %v600
      %628 = vmatprep.subr.mxu0 0.0
      %629 = vmatpush1.msra.mxu0 %v601
      %630 = vmatprep.subr.mxu0 0.0
      %631 = vmatpush1.msra.mxu0 %v602
      %632 = vmatprep.subr.mxu0 0.0
      %633 = vmatpush1.msra.mxu0 %v603
      %634 = vmatprep.subr.mxu0 0.0
      %635 = vmatpush1.msra.mxu0 %v604
      %636 = vmatprep.subr.mxu0 0.0
      %637 = vmatpush1.msra.mxu0 %v605
      %638 = vmatprep.subr.mxu0 0.0
      %639 = vmatpush1.msra.mxu0 %v606
      %640 = vmatprep.subr.mxu0 0.0
      %641 = vmatpush1.msra.mxu0 0.0
      %642 = vmatprep.subr.mxu0 0.0
      %643 = vmatpush1.msra.mxu0 0.0
      %644 = vmatprep.subr.mxu0 0.0
      %645 = vmatpush1.msra.mxu0 0.0
      %646 = vmatprep.subr.mxu0 0.0
      %647 = vmatpush1.msra.mxu0 0.0
      %648 = vmatprep.subr.mxu0 0.0
      %649 = vmatpush1.msra.mxu0 0.0
      %650 = vmatprep.subr.mxu0 0.0
      %651 = vmatpush1.msra.mxu0 0.0
      %652 = vmatprep.subr.mxu0 0.0
      %653 = vmatpush1.msra.mxu0 0.0
      %654 = vmatprep.subr.mxu0 0.0
      %655 = vmatpush1.msra.mxu0 0.0
      %656 = vmatprep.subr.mxu0 0.0
      %657 = vmatpush1.msra.mxu0 0.0
      %658 = vmatprep.subr.mxu0 0.0
      %659 = vmatpush1.msra.mxu0 0.0
      %660 = vmatprep.subr.mxu0 0.0
      %661 = vmatpush1.msra.mxu0 0.0
      %662 = vmatprep.subr.mxu0 0.0
      %663 = vmatpush1.msra.mxu0 0.0
      %664 = vmatprep.subr.mxu0 0.0
      %665 = vmatpush1.msra.mxu0 0.0
      %666 = vmatprep.subr.mxu0 0.0
      %667 = vmatpush1.msra.mxu0 0.0
      %668 = vmatprep.subr.mxu0 0.0
      %669 = vmatpush1.msra.mxu0 0.0
      %670 = vmatprep.subr.mxu0 0.0
      %671 = vmatpush1.msra.mxu0 0.0
      %672 = vmatprep.subr.mxu0 0.0
      %673 = vmatpush1.msra.mxu0 0.0
      %674 = vmatprep.subr.mxu0 0.0
      %675 = vmatpush1.msra.mxu0 0.0
      %676 = vmatprep.subr.mxu0 0.0
      %677 = vmatpush1.msra.mxu0 0.0
      %678 = vmatprep.subr.mxu0 0.0
      %679 = vmatpush1.msra.mxu0 0.0
      %680 = vmatprep.subr.mxu0 0.0
      %681 = vmatpush1.msra.mxu0 0.0
      %682 = vmatprep.subr.mxu0 0.0
      %683 = vmatpush1.msra.mxu0 0.0
      %684 = vmatprep.subr.mxu0 0.0
      %685 = vmatpush1.msra.mxu0 0.0
      %686 = vmatprep.subr.mxu0 0.0
      %687 = vmatpush1.msra.mxu0 0.0
      %688 = vmatprep.mubr.f32.mxu0 0.0
      %689 = vmatmul.mubr.f32.gmra.mrb[0].mxu0 %v616
      %v690 = vpop.f32.mrb[0].mxu0
      %v691 = vadd.f32 %v612, %v690
      %v692 = vpop.f32.mrb[0].mxu0
      %693 = vmatprep.mubr.f32.mxu0 0.0
      %694 = vmatmul.mubr.f32.gmra.mrb[0].mxu0 %v619
      %v695 = vpop.f32.mrb[0].mxu0
      %v696 = vadd.f32 %v612, %v695
      %v697 = vpop.f32.mrb[0].mxu0
      %698 = vmatprep.mubr.f32.mxu0 0.0
      %699 = vmatmul.mubr.f32.gmra.mrb[0].mxu0 %v622
      %v700 = vpop.f32.mrb[0].mxu0
      %v701 = vadd.f32 %v612, %v700
      %v702 = vpop.f32.mrb[0].mxu0
      %703 = vdwg.mxu0
      %v704 = vmax.f32 %v691, 0.0
      %v705 = vmax.f32 %v696, 0.0
      %v706 = vmax.f32 %v701, 0.0
      %v707 = vld [vmem:[%s7] sm:$0xff]
      %v708 = vld [vmem:[%s7 + $0x8] sm:$0xff]
      %v709 = vld [vmem:[%s7 + $0x10] sm:$0xff]
      %v710 = vld [vmem:[%s7 + $0x18] sm:$0xff]
      %v711 = vld [vmem:[%s7 + $0x20] sm:$0xff]
      %v712 = vld [vmem:[%s7 + $0x28] sm:$0xff]
      %v713 = vld [vmem:[%s7 + $0x30] sm:$0xff]
      %v714 = vld [vmem:[%s7 + $0x38] sm:$0xff]
      %v715 = vld [vmem:[%s7 + $0x40] sm:$0xff]
      %v716 = vld [vmem:[%s7 + $0x48] sm:$0xff]
      %v717 = vld [vmem:[%s7 + $0x50] sm:$0xff]
      %v718 = vld [vmem:[%s7 + $0x58] sm:$0xff]
      %v719 = vld [vmem:[%s7 + $0x60] sm:$0xff]
      %v720 = vld [vmem:[%s7 + $0x68] sm:$0xff]
      %v721 = vld [vmem:[%s7 + $0x70] sm:$0xff]
      %v722 = vld [vmem:[%s7 + $0x78] sm:$0xff]
      %v723 = vld [vmem:[%s8] sm:$0x1]
      %v725 = vlaneseq
      %v726 = vshrl.u32 %v725, 7
      %v727 = vsub.s32 0, %v726
      %v728 = vrot.slane %v723, %v727
      %730 = vmatprep.subr.mxu0 0.0
      %731 = vmatpush1.msra.mxu0 %v707
      %732 = vmatprep.subr.mxu0 0.0
      %733 = vmatpush1.msra.mxu0 %v708
      %734 = vmatprep.subr.mxu0 0.0
      %735 = vmatpush1.msra.mxu0 %v709
      %736 = vmatprep.subr.mxu0 0.0
      %737 = vmatpush1.msra.mxu0 %v710
      %738 = vmatprep.subr.mxu0 0.0
      %739 = vmatpush1.msra.mxu0 %v711
      %740 = vmatprep.subr.mxu0 0.0
      %741 = vmatpush1.msra.mxu0 %v712
      %742 = vmatprep.subr.mxu0 0.0
      %743 = vmatpush1.msra.mxu0 %v713
      %744 = vmatprep.subr.mxu0 0.0
      %745 = vmatpush1.msra.mxu0 %v714
      %746 = vmatprep.subr.mxu0 0.0
      %747 = vmatpush1.msra.mxu0 %v715
      %748 = vmatprep.subr.mxu0 0.0
      %749 = vmatpush1.msra.mxu0 %v716
      %750 = vmatprep.subr.mxu0 0.0
      %751 = vmatpush1.msra.mxu0 %v717
      %752 = vmatprep.subr.mxu0 0.0
      %753 = vmatpush1.msra.mxu0 %v718
      %754 = vmatprep.subr.mxu0 0.0
      %755 = vmatpush1.msra.mxu0 %v719
      %756 = vmatprep.subr.mxu0 0.0
      %757 = vmatpush1.msra.mxu0 %v720
      %758 = vmatprep.subr.mxu0 0.0
      %759 = vmatpush1.msra.mxu0 %v721
      %760 = vmatprep.subr.mxu0 0.0
      %761 = vmatpush1.msra.mxu0 %v722
      %762 = vmatprep.subr.mxu0 0.0
      %763 = vmatpush1.msra.mxu0 0.0
      %764 = vmatprep.subr.mxu0 0.0
      %765 = vmatpush1.msra.mxu0 0.0
      %766 = vmatprep.subr.mxu0 0.0
      %767 = vmatpush1.msra.mxu0 0.0
      %768 = vmatprep.subr.mxu0 0.0
      %769 = vmatpush1.msra.mxu0 0.0
      %770 = vmatprep.subr.mxu0 0.0
      %771 = vmatpush1.msra.mxu0 0.0
      %772 = vmatprep.subr.mxu0 0.0
      %773 = vmatpush1.msra.mxu0 0.0
      %774 = vmatprep.subr.mxu0 0.0
      %775 = vmatpush1.msra.mxu0 0.0
      %776 = vmatprep.subr.mxu0 0.0
      %777 = vmatpush1.msra.mxu0 0.0
      %778 = vmatprep.subr.mxu0 0.0
      %779 = vmatpush1.msra.mxu0 0.0
      %780 = vmatprep.subr.mxu0 0.0
      %781 = vmatpush1.msra.mxu0 0.0
      %782 = vmatprep.subr.mxu0 0.0
      %783 = vmatpush1.msra.mxu0 0.0
      %784 = vmatprep.subr.mxu0 0.0
      %785 = vmatpush1.msra.mxu0 0.0
      %786 = vmatprep.subr.mxu0 0.0
      %787 = vmatpush1.msra.mxu0 0.0
      %788 = vmatprep.subr.mxu0 0.0
      %789 = vmatpush1.msra.mxu0 0.0
      %790 = vmatprep.subr.mxu0 0.0
      %791 = vmatpush1.msra.mxu0 0.0
      %792 = vmatprep.subr.mxu0 0.0
      %793 = vmatpush1.msra.mxu0 0.0
      %794 = vmatprep.mubr.f32.mxu0 0.0
      %795 = vmatmul.mubr.f32.gmra.mrb[0].mxu0 %v704
      %v796 = vpop.f32.mrb[0].mxu0
      %v797 = vadd.f32 %v728, %v796
      %v798 = vpop.f32.mrb[0].mxu0
      %799 = vmatprep.mubr.f32.mxu0 0.0
      %800 = vmatmul.mubr.f32.gmra.mrb[0].mxu0 %v705
      %v801 = vpop.f32.mrb[0].mxu0
      %v802 = vadd.f32 %v728, %v801
      %v803 = vpop.f32.mrb[0].mxu0
      %804 = vmatprep.mubr.f32.mxu0 0.0
      %805 = vmatmul.mubr.f32.gmra.mrb[0].mxu0 %v706
      %v806 = vpop.f32.mrb[0].mxu0
      %v807 = vadd.f32 %v728, %v806
      %v808 = vpop.f32.mrb[0].mxu0
      %809 = vdwg.mxu0
      %v810 = vmax.f32 %v797, 0.0
      %v811 = vmax.f32 %v802, 0.0
      %v812 = vmax.f32 %v807, 0.0
      %v813 = vld [vmem:[%s9] sm:$0xff]
      %v814 = vld [vmem:[%s9 + $0x8] sm:$0xff]
      %v815 = vld [vmem:[%s9 + $0x10] sm:$0xff]
      %v816 = vld [vmem:[%s9 + $0x18] sm:$0xff]
      %v817 = vld [vmem:[%s10] sm:$0x1]
      %v819 = vlaneseq
      %v820 = vshrl.u32 %v819, 7
      %v821 = vsub.s32 0, %v820
      %v822 = vrot.slane %v817, %v821
      %v825 = vsel %vm506, %v810, 0
      %v828 = vsel %vm506, %v811, 0
      %v831 = vsel %vm506, %v812, 0
      %833 = vmatprep.subr.mxu0 0.0
      %834 = vmatpush1.msra.mxu0 %v813
      %835 = vmatprep.subr.mxu0 0.0
      %836 = vmatpush1.msra.mxu0 %v814
      %837 = vmatprep.subr.mxu0 0.0
      %838 = vmatpush1.msra.mxu0 %v815
      %839 = vmatprep.subr.mxu0 0.0
      %840 = vmatpush1.msra.mxu0 %v816
      %841 = vmatprep.subr.mxu0 0.0
      %842 = vmatpush1.msra.mxu0 0.0
      %843 = vmatprep.subr.mxu0 0.0
      %844 = vmatpush1.msra.mxu0 0.0
      %845 = vmatprep.subr.mxu0 0.0
      %846 = vmatpush1.msra.mxu0 0.0
      %847 = vmatprep.subr.mxu0 0.0
      %848 = vmatpush1.msra.mxu0 0.0
      %849 = vmatprep.subr.mxu0 0.0
      %850 = vmatpush1.msra.mxu0 0.0
      %851 = vmatprep.subr.mxu0 0.0
      %852 = vmatpush1.msra.mxu0 0.0
      %853 = vmatprep.subr.mxu0 0.0
      %854 = vmatpush1.msra.mxu0 0.0
      %855 = vmatprep.subr.mxu0 0.0
      %856 = vmatpush1.msra.mxu0 0.0
      %857 = vmatprep.subr.mxu0 0.0
      %858 = vmatpush1.msra.mxu0 0.0
      %859 = vmatprep.subr.mxu0 0.0
      %860 = vmatpush1.msra.mxu0 0.0
      %861 = vmatprep.subr.mxu0 0.0
      %862 = vmatpush1.msra.mxu0 0.0
      %863 = vmatprep.subr.mxu0 0.0
      %864 = vmatpush1.msra.mxu0 0.0
      %865 = vmatprep.subr.mxu0 0.0
      %866 = vmatpush1.msra.mxu0 0.0
      %867 = vmatprep.subr.mxu0 0.0
      %868 = vmatpush1.msra.mxu0 0.0
      %869 = vmatprep.subr.mxu0 0.0
      %870 = vmatpush1.msra.mxu0 0.0
      %871 = vmatprep.subr.mxu0 0.0
      %872 = vmatpush1.msra.mxu0 0.0
      %873 = vmatprep.subr.mxu0 0.0
      %874 = vmatpush1.msra.mxu0 0.0
      %875 = vmatprep.subr.mxu0 0.0
      %876 = vmatpush1.msra.mxu0 0.0
      %877 = vmatprep.subr.mxu0 0.0
      %878 = vmatpush1.msra.mxu0 0.0
      %879 = vmatprep.subr.mxu0 0.0
      %880 = vmatpush1.msra.mxu0 0.0
      %881 = vmatprep.subr.mxu0 0.0
      %882 = vmatpush1.msra.mxu0 0.0
      %883 = vmatprep.subr.mxu0 0.0
      %884 = vmatpush1.msra.mxu0 0.0
      %885 = vmatprep.subr.mxu0 0.0
      %886 = vmatpush1.msra.mxu0 0.0
      %887 = vmatprep.subr.mxu0 0.0
      %888 = vmatpush1.msra.mxu0 0.0
      %889 = vmatprep.subr.mxu0 0.0
      %890 = vmatpush1.msra.mxu0 0.0
      %891 = vmatprep.subr.mxu0 0.0
      %892 = vmatpush1.msra.mxu0 0.0
      %893 = vmatprep.subr.mxu0 0.0
      %894 = vmatpush1.msra.mxu0 0.0
      %895 = vmatprep.subr.mxu0 0.0
      %896 = vmatpush1.msra.mxu0 0.0
      %897 = vmatprep.mubr.f32.mxu0 0.0
      %898 = vmatmul.mubr.f32.gmra.mrb[0].mxu0 %v825
      %v899 = vpop.f32.mrb[0].mxu0
      %v900 = vadd.f32 %v822, %v899
      %v901 = vpop.f32.mrb[0].mxu0
      %902 = vmatprep.mubr.f32.mxu0 0.0
      %903 = vmatmul.mubr.f32.gmra.mrb[0].mxu0 %v828
      %v904 = vpop.f32.mrb[0].mxu0
      %v905 = vadd.f32 %v822, %v904
      %v906 = vpop.f32.mrb[0].mxu0
      %907 = vmatprep.mubr.f32.mxu0 0.0
      %908 = vmatmul.mubr.f32.gmra.mrb[0].mxu0 %v831
      %v909 = vpop.f32.mrb[0].mxu0
      %v910 = vadd.f32 %v822, %v909
      %v911 = vpop.f32.mrb[0].mxu0
      %912 = vdwg.mxu0
      %v913 = vmax.f32 %v900, 0.0
      %v914 = vmax.f32 %v905, 0.0
      %v915 = vmax.f32 %v910, 0.0
      %vm916 = vcmask 64512
      %917 = vst.msk [vmem:[%s388] sm:$0xff] %vm916, %v913
      %918 = vst.msk [vmem:[%s388 + $0x8] sm:$0xff] %vm916, %v914
      %919 = vst.msk [vmem:[%s388 + $0x10] sm:$0xff] %vm916, %v915
      %s920 = smul.u32 3, %s22
      %p921 = scmp.lt.s32.totalorder %s920, 5
      %s922 = scalar_select %p921, %s920, 5
      %s923 = smul.addr %s922, 8
      %s924 = scalar_lea.vmem %s11, %s923
      // Predicated region
      $region65: #{tpu_custom_call.1} parent=63 // pred_check
        %p925 = pneg %p276
      $region66: #{tpu_custom_call.1} parent=63 // pred_check_branch
        %927 = sbr.rel (%p925) target = $region68
      $region67: #{tpu_custom_call.1} parent=63 // pred_region
        %s928 = smul.u32 3, %s22
      $region68: #{tpu_custom_call.1} parent=63 // pred_fallthru
        _
    $region64: #{tpu_custom_call.1} parent=5 // pred_fallthru
      _
    %p929 = scmp.le.s32.totalorder 2, %s17
    // Predicated region
    $region69: #{tpu_custom_call.1} parent=5 // pred_check
      %p930 = pneg %p929
    $region70: #{tpu_custom_call.1} parent=5 // pred_check_branch
      %932 = sbr.rel (%p930) target = $region72
    $region71: #{tpu_custom_call.1} parent=5 // pred_region
      %s933 = ssub.s32 %s17, 2
      // Predicated region
      $region73: #{tpu_custom_call.1} parent=71 // pred_check
        %p934 = pneg %p282
      $region74: #{tpu_custom_call.1} parent=71 // pred_check_branch
        %936 = sbr.rel (%p934) target = $region76
      $region75: #{tpu_custom_call.1} parent=71 // pred_region
        %s937 = smul.u32 3, %s23
        %p938 = scmp.lt.s32.totalorder %s937, 5
        %s939 = scalar_select %p938, %s937, 5
        %s940 = smul.addr %s939, 8
        %s941 = scalar_lea.vmem %s11, %s940
      $region76: #{tpu_custom_call.1} parent=71 // pred_fallthru
        _
    $region72: #{tpu_custom_call.1} parent=5 // pred_fallthru
      _
  $region6: #{tpu_custom_call.1} parent=0 // loop_footer
    %s21 = sadd.s32 1, %s17
  $region7: #{tpu_custom_call.1} parent=0 // loop_footer_branch
    %16 = sbr.rel target = $region3
  $region8: #{tpu_custom_call.1} parent=0 // loop_exit
    _

</llo_original>
